<compile_context>
chip_gen: v5e
topology: v5e:2x2
jax: 0.10.0
libtpu: 0.0.40
codegen_flags: <defaults>
</compile_context>

<pallas_src>
import functools

import jax
import jax.numpy as jnp
from jax.experimental import pallas as pl
from jax.experimental.pallas import tpu as pltpu


def _hsigmoid_kernel(x_ref, o_ref):
    x = x_ref[...]
    three = jnp.asarray(3.0, x.dtype)
    zero = jnp.asarray(0.0, x.dtype)
    six = jnp.asarray(6.0, x.dtype)
    # relu6(x + 3) / 6  (divide by 6 to match the PyTorch reference bit-for-bit)
    o_ref[...] = jnp.clip(x + three, zero, six) / six


# Widest lane (last-dim) candidates; all multiples of 128.
_LANE_CANDIDATES = (8192, 4096, 2048, 1024, 512, 256, 128)
# ~8 MiB per tile (perf review: biggest lever on v7x). With input + output
# each double-buffered -> ~32 MiB VMEM, covered by the explicit limit below.
_TARGET_TILE_BYTES = 8 * 1024 * 1024
# Explicit scoped-VMEM limit: required on v5e (16 MiB default) and v7x
# (32 MiB default) once tiles exceed ~4 MiB; well under physical on all gens.
_VMEM_LIMIT_BYTES = 40 * 1024 * 1024
# Below this, pallas_call launch/pipeline overhead dominates; XLA fused
# elementwise is strictly better.
_MIN_PALLAS_ELEMS = 256 * 1024


def _cdiv(a: int, b: int) -> int:
    return -(-a // b)


def _round_up(a: int, m: int) -> int:
    return _cdiv(a, m) * m


def _hsigmoid_xla(x):
    dt = x.dtype
    return jnp.clip(x + jnp.asarray(3.0, dt),
                    jnp.asarray(0.0, dt),
                    jnp.asarray(6.0, dt)) / jnp.asarray(6.0, dt)


def hsigmoid(x: jax.Array, *,
             min_pallas_elems: int = _MIN_PALLAS_ELEMS,
             donate_input: bool = False) -> jax.Array:
    """Elementwise hard-sigmoid matching PyTorch ReLU6(x + 3) / 6. Any shape.

    Set donate_input=True only when the caller donates x at the jit boundary;
    it aliases the output onto the input buffer (saves an n-byte HBM alloc).
    """
    n = x.size

    # Small-input fast path: skip the kernel entirely.
    if n == 0 or n < min_pallas_elems:
        return _hsigmoid_xla(x)

    # Pick the widest lane width that divides n exactly -> zero padding,
    # zero extra HBM round trips (reshape of a contiguous array is free).
    lane = None
    for c in _LANE_CANDIDATES:
        if n % c == 0:
            lane = c
            break
    if lane is None:
        # n not a multiple of 128: a padding copy would cost a full extra HBM
        # round trip, which defeats the purpose for a memory-bound op.
        return _hsigmoid_xla(x)

    rows = n // lane
    itemsize = jnp.dtype(x.dtype).itemsize
    row_bytes = lane * itemsize

    # dtype-aware sublane packing: 8 rows for f32, 16 for bf16, 32 for 1-byte.
    sublane_mult = max(8, 32 // itemsize)

    # ~8 MiB tiles, rounded to the native sublane multiple.
    block_rows = max(1, _TARGET_TILE_BYTES // row_bytes)
    if block_rows >= rows:
        block_rows = rows  # single full-extent block: always legal
    else:
        block_rows = max(sublane_mult, (block_rows // sublane_mult) * sublane_mult)
        n_steps = _cdiv(rows, block_rows)
        # Short grids on v7x: prefer an even step count so both TCs get equal
        # work (dimension_semantics shards the parallel axis across cores).
        if 1 < n_steps <= 8 and n_steps % 2 == 1:
            n_steps += 1
        # Balance so the trailing (ragged) block is close to full size.
        block_rows = min(rows, _round_up(_cdiv(rows, n_steps), sublane_mult))

    grid = (_cdiv(rows, block_rows),)  # ragged last block masked by Pallas

    x2d = x.reshape(rows, lane)

    out2d = pl.pallas_call(
        _hsigmoid_kernel,
        out_shape=jax.ShapeDtypeStruct((rows, lane), x.dtype),
        grid_spec=pl.GridSpec(
            grid=grid,
            in_specs=[pl.BlockSpec((block_rows, lane), lambda i: (i, 0))],
            out_specs=pl.BlockSpec((block_rows, lane), lambda i: (i, 0)),
        ),
        compiler_params=pltpu.CompilerParams(
            # single independent axis; shards across TensorCores on v7x
            dimension_semantics=("parallel",),
            vmem_limit_bytes=_VMEM_LIMIT_BYTES),
        cost_estimate=pl.CostEstimate(
            flops=4 * n,  # add, max, min, divide
            transcendentals=0,
            bytes_accessed=2 * n * itemsize),
        input_output_aliases=({0: 0} if donate_input else {}),
    )(x2d)

    return out2d.reshape(x.shape)


if __name__ == "__main__":
    key = jax.random.PRNGKey(0)
    k1, k2, k3 = jax.random.split(key, 3)

    # Small NCHW shape consistent with the module spec, forced through the
    # Pallas path so the kernel itself is exercised.
    hsig_forced = jax.jit(functools.partial(hsigmoid, min_pallas_elems=0))
    x_small = jax.random.normal(k1, (2, 4, 16, 16), dtype=jnp.float32) * 4.0
    y_small = jax.block_until_ready(hsig_forced(x_small))
    ref_small = jnp.clip(x_small + 3.0, 0.0, 6.0) / 6.0
    assert y_small.shape == x_small.shape and y_small.dtype == x_small.dtype
    assert jnp.allclose(y_small, ref_small, atol=1e-6), "small-input mismatch"

    # bf16 through the forced Pallas path (exercises dtype-aware rounding).
    x_bf16 = (jax.random.normal(k3, (2, 4, 16, 16), dtype=jnp.float32) * 4.0
              ).astype(jnp.bfloat16)
    y_bf16 = jax.block_until_ready(hsig_forced(x_bf16))
    ref_bf16 = (jnp.clip(x_bf16.astype(jnp.float32) + 3.0, 0.0, 6.0) / 6.0
                ).astype(jnp.bfloat16)
    assert y_bf16.dtype == jnp.bfloat16
    assert jnp.allclose(y_bf16.astype(jnp.float32),
                        ref_bf16.astype(jnp.float32),
                        atol=2e-2, rtol=2e-2), "bf16 mismatch"

    # Larger input that exercises the default tiled / pipelined path
    # (4M elements -> lane=8192, 512 rows, 8 MiB tiles, 2 grid steps).
    hsig = jax.jit(hsigmoid)
    x_big = jax.random.normal(k2, (8, 32, 128, 128), dtype=jnp.float32) * 4.0
    y_big = jax.block_until_ready(hsig(x_big))
    ref_big = jnp.clip(x_big + 3.0, 0.0, 6.0) / 6.0
    assert y_big.shape == x_big.shape and y_big.dtype == x_big.dtype
    assert jnp.allclose(y_big, ref_big, atol=1e-6), "large-input mismatch"

    print("KERNEL_OK")
</pallas_src>

<mosaic_0001>
module attributes {stable_mosaic.version = 11 : i64} {
  func.func @_hsigmoid_kernel(%arg0: i32, %arg1: memref<1x2048xf32, #tpu.memory_space<vmem>>, %arg2: memref<1x2048xf32, #tpu.memory_space<vmem>>) attributes {dimension_semantics = [#tpu.dimension_semantics<parallel>], iteration_bounds = array<i64: 1>, scalar_prefetch = 0 : i64, scratch_operands = 0 : i64, tpu.core_type = #tpu.core_type<tc>, window_params = [{transform_indices = @transform_0, window_bounds = array<i64: 1, 2048>}, {transform_indices = @transform_1, window_bounds = array<i64: 1, 2048>}]} {
    %c0 = arith.constant 0 : index
    %c0_0 = arith.constant 0 : index
    %0 = vector.load %arg1[%c0, %c0_0] : memref<1x2048xf32, #tpu.memory_space<vmem>>, vector<1x2048xf32>
    %cst = arith.constant 3.000000e+00 : f32
    %1 = vector.broadcast %cst : f32 to vector<1x2048xf32>
    %2 = arith.addf %0, %1 : vector<1x2048xf32>
    %cst_1 = arith.constant 0.000000e+00 : f32
    %cst_2 = arith.constant 6.000000e+00 : f32
    %3 = vector.broadcast %cst_1 : f32 to vector<1x2048xf32>
    %4 = arith.maximumf %3, %2 : vector<1x2048xf32>
    %5 = vector.broadcast %cst_2 : f32 to vector<1x2048xf32>
    %6 = arith.minimumf %5, %4 : vector<1x2048xf32>
    %cst_3 = arith.constant 6.000000e+00 : f32
    %7 = vector.broadcast %cst_3 : f32 to vector<1x2048xf32>
    %8 = arith.divf %6, %7 : vector<1x2048xf32>
    %c0_4 = arith.constant 0 : index
    %c0_5 = arith.constant 0 : index
    %9 = vector.load %arg2[%c0_4, %c0_5] : memref<1x2048xf32, #tpu.memory_space<vmem>>, vector<1x2048xf32>
    tpu.vector_store %arg2[%c0_4, %c0_5], %8 {strides = array<i32>} : memref<1x2048xf32, #tpu.memory_space<vmem>>, vector<1x2048xf32>,
    return
  }
  func.func @transform_0(%arg0: i32) -> (i32, i32) {
    %c0_i32 = arith.constant 0 : i32
    %c0_i32_0 = arith.constant 0 : i32
    return %arg0, %c0_i32 : i32, i32
  }
  func.func @transform_1(%arg0: i32) -> (i32, i32) {
    %c0_i32 = arith.constant 0 : i32
    %c0_i32_0 = arith.constant 0 : i32
    return %arg0, %c0_i32 : i32, i32
  }
}

</mosaic_0001>

<llo_original>
// kernel: hsigmoid.1
$region0: #{hsigmoid.1}
  #allocation0 [shape = 'u32[]', space=smem, size = 0x4, offset = 0x4, fixed_abs, tag = 'smem constant byte address 0x4 - core index']
  #allocation1 [shape = 'u32[72,128]{1,0:T(1,128)}', space=vmem, size = 0x9000, scoped, tag = 'internal scratch']
  %s0 = inlined_call_operand.vmem [shape: f32[1,2048], index: 0, kind: input, shape index: {}]
  %s1 = inlined_call_operand.vmem [shape: f32[1,2048], index: 1, kind: output, shape index: {}]
  %s2 = sld [smem:[#allocation0]]
  $region14: #{hsigmoid.1} parent=0
    _
  %s4 = ssub.s32 1, %s2
  %s5 = scalar_select 0, %s4, %s2
  // Predicated region
  $region2: #{hsigmoid.1} parent=0 // pred_check
    _
  $region3: #{hsigmoid.1} parent=0 // pred_check_branch
    %7 = sbr.rel (0) target = $region5
  $region4: #{hsigmoid.1} parent=0 // pred_region
    _
  $region5: #{hsigmoid.1} parent=0 // pred_fallthru
    _
  %v8 = vld [vmem:[%s0] sm:$0xff]
  %v9 = vld [vmem:[%s0 + $0x8] sm:$0xff]
  %v10 = vadd.f32 %v8, 3.0
  %v11 = vadd.f32 %v9, 3.0
  %v12 = vmax.f32 %v10, 0.0
  %v13 = vmax.f32 %v11, 0.0
  %v14 = vmin.f32 %v12, 6.0
  %v15 = vmin.f32 %v13, 6.0
  %v16 = vrcp.pop 6.0
  %v17 = vmul.f32 6.0, %v16
  %v18 = vsub.f32 1.0, %v17
  %v19 = vmul.f32 %v16, %v18
  %v20 = vadd.f32 %v16, %v19
  %vm21 = vweird.f32 %v16
  %v22 = vsel %vm21, %v16, %v20
  %v23 = vmul.f32 %v14, %v22
  %v24 = vmul.f32 %v15, %v22
  %25 = vst [vmem:[%s1] sm:$0xff] %v23
  %26 = vst [vmem:[%s1 + $0x8] sm:$0xff] %v24
  // Predicated region
  $region6: #{hsigmoid.1} parent=0 // pred_check
    _
  $region7: #{hsigmoid.1} parent=0 // pred_check_branch
    %28 = sbr.rel (0) target = $region9
  $region8: #{hsigmoid.1} parent=0 // pred_region
    _
  $region9: #{hsigmoid.1} parent=0 // pred_fallthru
    _
  // Predicated region
  $region10: #{hsigmoid.1} parent=0 // pred_check
    _
  $region11: #{hsigmoid.1} parent=0 // pred_check_branch
    %30 = sbr.rel (0) target = $region13
  $region12: #{hsigmoid.1} parent=0 // pred_region
    _
  $region13: #{hsigmoid.1} parent=0 // pred_fallthru
    _

</llo_original>
